<compile_context>
chip_gen: v5e
topology: v5e:2x2
jax: 0.10.0
libtpu: 0.0.40
codegen_flags: <defaults>
</compile_context>

<pallas_src>
import functools

import jax
import jax.numpy as jnp
from jax.experimental import pallas as pl
from jax.experimental.pallas import tpu as pltpu

BN_EPS = 1e-5
OUT_ROWS = 18      # 6 disc + 6 mu + 6 sigma, compacted (no dead rows)
PARAM_ROWS = 24    # 18 used + 6 sublane pad rows


def _hybrid_actor_kernel(p_ref, st_ref, obs_ref, out_ref):
    """One batch tile: obs [3, TB] f32 -> out [18, TB] = (softmax(fc2)|mu|sigma)."""
    x = obs_ref[...]                        # [3, TB]  feature-major, batch on lanes
    p = p_ref[...]                          # [24, 8]  static packed params (resident)
    st = st_ref[...]                        # [8, 8]   per-call folded BN stats (resident)

    wh    = p[0:18, 0:4]                    # fused head weights (fc2 | mu | sigma)
    bh    = p[0:18, 4:5]                    # fused head biases              [18, 1]
    dmask = p[0:18, 5:6]                    # 1.0 on softmax rows 0:6        [18, 1]
    epsc  = p[0:18, 6:7]                    # 1e-8 on sigma rows 12:18       [18, 1]
    w1s   = st[0:4, 0:3]                    # fc1 weight * bn scale          [4, 3]
    shift = st[0:4, 3:4]                    # beta - bn_mean * scale         [4, 1]

    # ---- fc1 + BatchNorm(affine, hoisted batch stats): 3 VPU broadcast-FMAs. ----
    h = shift + w1s[:, 0:1] * x[0:1, :]
    h = h + w1s[:, 1:2] * x[1:2, :]
    h = h + w1s[:, 2:3] * x[2:3, :]
    x_ = jnp.maximum(h, 0.0)                # [4, TB]  (ReLU)

    # ---- fused heads (Linear 4 -> 18): 4 broadcast-FMAs, ReLU, +eps on sigma. ----
    y = bh + wh[:, 0:1] * x_[0:1, :]
    y = y + wh[:, 1:2] * x_[1:2, :]
    y = y + wh[:, 2:3] * x_[2:3, :]
    y = y + wh[:, 3:4] * x_[3:4, :]
    y = jnp.maximum(y, 0.0) + epsc          # [18, TB]

    # ---- softmax over the 6 disc rows only, done full-width with a row mask ----
    # (no sublane slicing / shuffling; extra exp rows ride free EUP slack).
    disc = dmask > 0.5
    ym = jnp.where(disc, y, -1e30)
    m = jnp.max(ym, axis=0, keepdims=True)              # [1, TB]
    e = jnp.exp(ym - m)                                  # non-disc rows -> 0
    s = jnp.sum(e, axis=0, keepdims=True)
    r = pl.reciprocal(s, approx=True)                    # EUP slot
    r = r * (2.0 - s * r)                                # one NR step -> ~exact
    out = jnp.where(disc, e * r, y)

    out_ref[...] = out.astype(out_ref.dtype)             # single lane-dense store


def _round_up(n, m):
    return ((n + m - 1) // m) * m


def _fold_bn_stats(obs_f32, w1, gamma, beta):
    """Hoisted training-mode BatchNorm1d stats (tiny XLA reduction in wrapper).

    mean_h = w1 @ mean(obs); var_h = diag(w1 @ Cov(obs) @ w1^T) (biased, matching
    PyTorch's normalization path).  The fc1 bias cancels exactly and is dropped.
    """
    b = obs_f32.shape[0]
    mu3 = jnp.mean(obs_f32, axis=0)                      # [3]
    xc = obs_f32 - mu3
    cov = (xc.T @ xc) / b                                # [3, 3]
    mean_h = w1 @ mu3                                    # [4]
    var_h = jnp.sum((w1 @ cov) * w1, axis=1)             # [4]
    scale = gamma * jax.lax.rsqrt(var_h + BN_EPS)
    shift = beta - mean_h * scale
    st = jnp.zeros((8, 8), jnp.float32)
    st = st.at[0:4, 0:3].set(w1 * scale[:, None])
    st = st.at[0:4, 3].set(shift)
    return st


@functools.partial(jax.jit, static_argnames=("block_b", "out_dtype"))
def hybrid_reparam_actor_forward(obs, prepared, *, block_b=1024,
                                 out_dtype=jnp.bfloat16):
    obs_f = obs.astype(jnp.float32)
    b = obs_f.shape[0]                                   # requires b > 1 (BN)
    stats = _fold_bn_stats(obs_f, prepared["w1"],
                           prepared["bn_gamma"], prepared["bn_beta"])

    tb = min(block_b, _round_up(b, 128))                 # lane-dense batch tile
    b_pad = _round_up(b, tb)
    obs_t = obs_f.T                                      # [3, b]
    if b_pad != b:
        obs_t = jnp.zeros((3, b_pad), jnp.float32).at[:, :b].set(obs_t)

    out_bytes = OUT_ROWS * jnp.dtype(out_dtype).itemsize
    cost = pl.CostEstimate(flops=260 * b_pad,
                           transcendentals=19 * b_pad,
                           bytes_accessed=(12 + out_bytes) * b_pad + 1024)

    out = pl.pallas_call(
        _hybrid_actor_kernel,
        out_shape=jax.ShapeDtypeStruct((OUT_ROWS, b_pad), out_dtype),
        grid=(b_pad // tb,),
        in_specs=[
            pl.BlockSpec((PARAM_ROWS, 8), lambda i: (0, 0)),   # VMEM-resident
            pl.BlockSpec((8, 8), lambda i: (0, 0)),            # VMEM-resident
            pl.BlockSpec((3, tb), lambda i: (0, i)),
        ],
        out_specs=pl.BlockSpec((OUT_ROWS, tb), lambda i: (0, i)),
        compiler_params=pltpu.CompilerParams(
            dimension_semantics=("parallel",)),                # megacore on v7x
        cost_estimate=cost,
    )(prepared["packed"], stats, obs_t)

    # One combined transpose of the compacted output, then cheap lane slices.
    out_bt = out[:, :b].T.astype(jnp.float32)            # [b, 18]
    return out_bt[:, 0:6], out_bt[:, 6:12], out_bt[:, 12:18]


def forward(inputs, prepared, tmp=0, **kw):
    """Mirrors HybridReparamActorMLP.forward(inputs, tmp=0)."""
    action_type, mu, sigma = hybrid_reparam_actor_forward(inputs["obs"],
                                                          prepared, **kw)
    ret = {"logit": {"action_type": action_type,
                     "action_args": {"mu": mu, "sigma": sigma}},
           "tmp": tmp}
    if "mask" in inputs:
        ret["action_mask"] = inputs["mask"]
    return ret


def init_params(key):
    """Parameters in PyTorch nn.Linear layout: weight [out, in], bias [out]."""
    ks = jax.random.split(key, 10)

    def linear(kw_, kb_, out_f, in_f):
        bound = 1.0 / jnp.sqrt(jnp.float32(in_f))
        w = jax.random.uniform(kw_, (out_f, in_f), jnp.float32, -bound, bound)
        bias = jax.random.uniform(kb_, (out_f,), jnp.float32, -bound, bound)
        return w, bias

    w1, b1 = linear(ks[0], ks[1], 4, 3)
    w2, b2 = linear(ks[2], ks[3], 6, 4)
    w2m, b2m = linear(ks[4], ks[5], 6, 4)
    w2s, b2s = linear(ks[6], ks[7], 6, 4)
    # PyTorch BN defaults are gamma=1, beta=0; perturb to exercise the affine path.
    gamma = 1.0 + 0.1 * jax.random.normal(ks[8], (4,), jnp.float32)
    beta = 0.1 * jax.random.normal(ks[9], (4,), jnp.float32)
    return {"w1": w1, "b1": b1, "bn_gamma": gamma, "bn_beta": beta,
            "w2": w2, "b2": b2, "w2_mu": w2m, "b2_mu": b2m,
            "w2_sigma": w2s, "b2_sigma": b2s}


def prepare_params(params):
    """Static packing: heads fused at 6-row stride into one [24, 8] VMEM array.

    Rows 0:6 / 6:12 / 12:18 = fc2 / fc2_cont_mu / fc2_cont_sigma; cols 0:4
    weights, col 4 bias, col 5 softmax row mask, col 6 sigma eps.
    fc1 bias intentionally dropped (cancels under training-mode BatchNorm).
    """
    p = jnp.zeros((PARAM_ROWS, 8), jnp.float32)
    p = p.at[0:6, 0:4].set(params["w2"])
    p = p.at[0:6, 4].set(params["b2"])
    p = p.at[6:12, 0:4].set(params["w2_mu"])
    p = p.at[6:12, 4].set(params["b2_mu"])
    p = p.at[12:18, 0:4].set(params["w2_sigma"])
    p = p.at[12:18, 4].set(params["b2_sigma"])
    p = p.at[0:6, 5].set(1.0)        # discrete (softmax) row mask
    p = p.at[12:18, 6].set(1e-8)     # sigma epsilon
    return {"packed": p, "w1": params["w1"],
            "bn_gamma": params["bn_gamma"], "bn_beta": params["bn_beta"]}


def _reference(obs, params):
    """Pure-JAX reference, faithful to the PyTorch module (includes fc1 bias)."""
    h = obs @ params["w1"].T + params["b1"]
    mean = jnp.mean(h, axis=0, keepdims=True)
    var = jnp.mean((h - mean) ** 2, axis=0, keepdims=True)
    h = (h - mean) / jnp.sqrt(var + BN_EPS) * params["bn_gamma"] + params["bn_beta"]
    x_ = jnp.maximum(h, 0.0)
    d = jnp.maximum(x_ @ params["w2"].T + params["b2"], 0.0)
    logit = jax.nn.softmax(d, axis=-1)
    mu = jnp.maximum(x_ @ params["w2_mu"].T + params["b2_mu"], 0.0)
    sigma = jnp.maximum(x_ @ params["w2_sigma"].T + params["b2_sigma"], 0.0) + 1e-8
    return logit, mu, sigma


if __name__ == "__main__":
    key = jax.random.PRNGKey(0)
    k_obs, k_obs2, k_params = jax.random.split(key, 3)

    params = init_params(k_params)
    prepared = prepare_params(params)   # packed once, reused every call

    def check(obs, out_dtype, tol):
        out = forward({"obs": obs,
                       "mask": jnp.ones((obs.shape[0], 6), jnp.float32)},
                      prepared, tmp=0, out_dtype=out_dtype)
        logit = out["logit"]["action_type"]
        mu = out["logit"]["action_args"]["mu"]
        sigma = out["logit"]["action_args"]["sigma"]
        for t in (logit, mu, sigma):
            t.block_until_ready()
        ref_logit, ref_mu, ref_sigma = _reference(obs, params)
        bsz = obs.shape[0]
        assert logit.shape == (bsz, 6) and mu.shape == (bsz, 6) and sigma.shape == (bsz, 6)
        assert jnp.allclose(logit, ref_logit, rtol=tol, atol=tol), "action_type mismatch"
        assert jnp.allclose(mu, ref_mu, rtol=tol, atol=tol), "mu mismatch"
        assert jnp.allclose(sigma, ref_sigma, rtol=tol, atol=tol), "sigma mismatch"
        assert out["tmp"] == 0 and "action_mask" in out

    # Small, non-multiple-of-128 batch (exercises lane padding); f32 path at
    # tight tolerance proves the math, bf16 path is the default memory layout.
    obs_small = jax.random.normal(k_obs, (300, 3), jnp.float32)
    check(obs_small, jnp.float32, 1e-4)
    check(obs_small, jnp.bfloat16, 2e-2)

    # Multi-block grid: two 1024-lane tiles, last one partially padded.
    obs_big = jax.random.normal(k_obs2, (1536, 3), jnp.float32)
    check(obs_big, jnp.bfloat16, 2e-2)

    print("KERNEL_OK")
</pallas_src>

<mosaic_0001>
module attributes {stable_mosaic.version = 11 : i64} {
  func.func @_hybrid_actor_kernel(%arg0: i32, %arg1: memref<24x8xf32, #tpu.memory_space<vmem>>, %arg2: memref<8x8xf32, #tpu.memory_space<vmem>>, %arg3: memref<3x384xf32, #tpu.memory_space<vmem>>, %arg4: memref<18x384xf32, #tpu.memory_space<vmem>>) attributes {dimension_semantics = [#tpu.dimension_semantics<parallel>], iteration_bounds = array<i64: 1>, scalar_prefetch = 0 : i64, scratch_operands = 0 : i64, tpu.core_type = #tpu.core_type<tc>, window_params = [{pipeline_mode = #tpu.pipeline_mode<synchronous>, transform_indices = @transform_0, window_bounds = array<i64: 24, 8>}, {pipeline_mode = #tpu.pipeline_mode<synchronous>, transform_indices = @transform_1, window_bounds = array<i64: 8, 8>}, {transform_indices = @transform_2, window_bounds = array<i64: 3, 384>}, {transform_indices = @transform_3, window_bounds = array<i64: 18, 384>}]} {
    %c0 = arith.constant 0 : index
    %c0_0 = arith.constant 0 : index
    %0 = vector.load %arg3[%c0, %c0_0] : memref<3x384xf32, #tpu.memory_space<vmem>>, vector<3x384xf32>
    %c0_1 = arith.constant 0 : index
    %c0_2 = arith.constant 0 : index
    %1 = vector.load %arg1[%c0_1, %c0_2] : memref<24x8xf32, #tpu.memory_space<vmem>>, vector<24x8xf32>
    %c0_3 = arith.constant 0 : index
    %c0_4 = arith.constant 0 : index
    %2 = vector.load %arg2[%c0_3, %c0_4] : memref<8x8xf32, #tpu.memory_space<vmem>>, vector<8x8xf32>
    %3 = vector.extract_strided_slice %1 {offsets = [0, 0], sizes = [18, 4], strides = [1, 1]} : vector<24x8xf32> to vector<18x4xf32>
    %4 = vector.extract_strided_slice %1 {offsets = [0, 4], sizes = [18, 1], strides = [1, 1]} : vector<24x8xf32> to vector<18x1xf32>
    %5 = vector.extract_strided_slice %1 {offsets = [0, 5], sizes = [18, 1], strides = [1, 1]} : vector<24x8xf32> to vector<18x1xf32>
    %6 = vector.extract_strided_slice %1 {offsets = [0, 6], sizes = [18, 1], strides = [1, 1]} : vector<24x8xf32> to vector<18x1xf32>
    %7 = vector.extract_strided_slice %2 {offsets = [0, 0], sizes = [4, 3], strides = [1, 1]} : vector<8x8xf32> to vector<4x3xf32>
    %8 = vector.extract_strided_slice %2 {offsets = [0, 3], sizes = [4, 1], strides = [1, 1]} : vector<8x8xf32> to vector<4x1xf32>
    %9 = vector.extract_strided_slice %7 {offsets = [0, 0], sizes = [4, 1], strides = [1, 1]} : vector<4x3xf32> to vector<4x1xf32>
    %10 = vector.extract_strided_slice %0 {offsets = [0, 0], sizes = [1, 384], strides = [1, 1]} : vector<3x384xf32> to vector<1x384xf32>
    %11 = vector.broadcast %9 : vector<4x1xf32> to vector<4x384xf32>
    %12 = vector.broadcast %10 : vector<1x384xf32> to vector<4x384xf32>
    %13 = arith.mulf %11, %12 : vector<4x384xf32>
    %14 = vector.broadcast %8 : vector<4x1xf32> to vector<4x384xf32>
    %15 = arith.addf %14, %13 : vector<4x384xf32>
    %16 = vector.extract_strided_slice %7 {offsets = [0, 1], sizes = [4, 1], strides = [1, 1]} : vector<4x3xf32> to vector<4x1xf32>
    %17 = vector.extract_strided_slice %0 {offsets = [1, 0], sizes = [1, 384], strides = [1, 1]} : vector<3x384xf32> to vector<1x384xf32>
    %18 = vector.broadcast %16 : vector<4x1xf32> to vector<4x384xf32>
    %19 = vector.broadcast %17 : vector<1x384xf32> to vector<4x384xf32>
    %20 = arith.mulf %18, %19 : vector<4x384xf32>
    %21 = arith.addf %15, %20 : vector<4x384xf32>
    %22 = vector.extract_strided_slice %7 {offsets = [0, 2], sizes = [4, 1], strides = [1, 1]} : vector<4x3xf32> to vector<4x1xf32>
    %23 = vector.extract_strided_slice %0 {offsets = [2, 0], sizes = [1, 384], strides = [1, 1]} : vector<3x384xf32> to vector<1x384xf32>
    %24 = vector.broadcast %22 : vector<4x1xf32> to vector<4x384xf32>
    %25 = vector.broadcast %23 : vector<1x384xf32> to vector<4x384xf32>
    %26 = arith.mulf %24, %25 : vector<4x384xf32>
    %27 = arith.addf %21, %26 : vector<4x384xf32>
    %cst = arith.constant 0.000000e+00 : f32
    %28 = vector.broadcast %cst : f32 to vector<4x384xf32>
    %29 = arith.maximumf %27, %28 : vector<4x384xf32>
    %30 = vector.extract_strided_slice %3 {offsets = [0, 0], sizes = [18, 1], strides = [1, 1]} : vector<18x4xf32> to vector<18x1xf32>
    %31 = vector.extract_strided_slice %29 {offsets = [0, 0], sizes = [1, 384], strides = [1, 1]} : vector<4x384xf32> to vector<1x384xf32>
    %32 = vector.broadcast %30 : vector<18x1xf32> to vector<18x384xf32>
    %33 = vector.broadcast %31 : vector<1x384xf32> to vector<18x384xf32>
    %34 = arith.mulf %32, %33 : vector<18x384xf32>
    %35 = vector.broadcast %4 : vector<18x1xf32> to vector<18x384xf32>
    %36 = arith.addf %35, %34 : vector<18x384xf32>
    %37 = vector.extract_strided_slice %3 {offsets = [0, 1], sizes = [18, 1], strides = [1, 1]} : vector<18x4xf32> to vector<18x1xf32>
    %38 = vector.extract_strided_slice %29 {offsets = [1, 0], sizes = [1, 384], strides = [1, 1]} : vector<4x384xf32> to vector<1x384xf32>
    %39 = vector.broadcast %37 : vector<18x1xf32> to vector<18x384xf32>
    %40 = vector.broadcast %38 : vector<1x384xf32> to vector<18x384xf32>
    %41 = arith.mulf %39, %40 : vector<18x384xf32>
    %42 = arith.addf %36, %41 : vector<18x384xf32>
    %43 = vector.extract_strided_slice %3 {offsets = [0, 2], sizes = [18, 1], strides = [1, 1]} : vector<18x4xf32> to vector<18x1xf32>
    %44 = vector.extract_strided_slice %29 {offsets = [2, 0], sizes = [1, 384], strides = [1, 1]} : vector<4x384xf32> to vector<1x384xf32>
    %45 = vector.broadcast %43 : vector<18x1xf32> to vector<18x384xf32>
    %46 = vector.broadcast %44 : vector<1x384xf32> to vector<18x384xf32>
    %47 = arith.mulf %45, %46 : vector<18x384xf32>
    %48 = arith.addf %42, %47 : vector<18x384xf32>
    %49 = vector.extract_strided_slice %3 {offsets = [0, 3], sizes = [18, 1], strides = [1, 1]} : vector<18x4xf32> to vector<18x1xf32>
    %50 = vector.extract_strided_slice %29 {offsets = [3, 0], sizes = [1, 384], strides = [1, 1]} : vector<4x384xf32> to vector<1x384xf32>
    %51 = vector.broadcast %49 : vector<18x1xf32> to vector<18x384xf32>
    %52 = vector.broadcast %50 : vector<1x384xf32> to vector<18x384xf32>
    %53 = arith.mulf %51, %52 : vector<18x384xf32>
    %54 = arith.addf %48, %53 : vector<18x384xf32>
    %cst_5 = arith.constant 0.000000e+00 : f32
    %55 = vector.broadcast %cst_5 : f32 to vector<18x384xf32>
    %56 = arith.maximumf %54, %55 : vector<18x384xf32>
    %57 = vector.broadcast %6 : vector<18x1xf32> to vector<18x384xf32>
    %58 = arith.addf %56, %57 : vector<18x384xf32>
    %cst_6 = arith.constant 5.000000e-01 : f32
    %59 = vector.broadcast %cst_6 : f32 to vector<18x1xf32>
    %60 = arith.cmpf ogt, %5, %59 : vector<18x1xf32>
    %cst_7 = arith.constant -1.000000e+30 : f32
    %61 = vector.shape_cast %60 : vector<18x1xi1> to vector<18x1xi1>
    %62 = vector.broadcast %61 : vector<18x1xi1> to vector<18x384xi1>
    %63 = vector.broadcast %cst_7 : f32 to vector<18x384xf32>
    %64 = arith.select %62, %58, %63 : vector<18x384xi1>, vector<18x384xf32>
    %cst_8 = arith.constant dense<0xFF800000> : vector<384xf32>
    %65 = vector.multi_reduction <maximumf>, %64, %cst_8 [0] : vector<18x384xf32> to vector<384xf32>
    %66 = vector.shape_cast %65 : vector<384xf32> to vector<1x384xf32>
    %67 = vector.broadcast %66 : vector<1x384xf32> to vector<18x384xf32>
    %68 = arith.subf %64, %67 : vector<18x384xf32>
    %69 = math.exp %68 : vector<18x384xf32>
    %cst_9 = arith.constant dense<0.000000e+00> : vector<384xf32>
    %70 = vector.multi_reduction <add>, %69, %cst_9 [0] : vector<18x384xf32> to vector<384xf32>
    %71 = vector.shape_cast %70 : vector<384xf32> to vector<1x384xf32>
    %72 = tpu.reciprocal %71 {approx = true} : vector<1x384xf32> -> vector<1x384xf32>
    %73 = arith.mulf %71, %72 : vector<1x384xf32>
    %cst_10 = arith.constant 2.000000e+00 : f32
    %74 = vector.broadcast %cst_10 : f32 to vector<1x384xf32>
    %75 = arith.subf %74, %73 : vector<1x384xf32>
    %76 = arith.mulf %72, %75 : vector<1x384xf32>
    %77 = vector.broadcast %76 : vector<1x384xf32> to vector<18x384xf32>
    %78 = arith.mulf %69, %77 : vector<18x384xf32>
    %79 = vector.shape_cast %60 : vector<18x1xi1> to vector<18x1xi1>
    %80 = vector.broadcast %79 : vector<18x1xi1> to vector<18x384xi1>
    %81 = arith.select %80, %78, %58 : vector<18x384xi1>, vector<18x384xf32>
    %c0_11 = arith.constant 0 : index
    %c0_12 = arith.constant 0 : index
    %82 = vector.load %arg4[%c0_11, %c0_12] : memref<18x384xf32, #tpu.memory_space<vmem>>, vector<18x384xf32>
    tpu.vector_store %arg4[%c0_11, %c0_12], %81 {strides = array<i32>} : memref<18x384xf32, #tpu.memory_space<vmem>>, vector<18x384xf32>,
    return
  }
  func.func @transform_0(%arg0: i32) -> (i32, i32) {
    %c0_i32 = arith.constant 0 : i32
    %c0_i32_0 = arith.constant 0 : i32
    %c0_i32_1 = arith.constant 0 : i32
    return %c0_i32, %c0_i32_0 : i32, i32
  }
  func.func @transform_1(%arg0: i32) -> (i32, i32) {
    %c0_i32 = arith.constant 0 : i32
    %c0_i32_0 = arith.constant 0 : i32
    %c0_i32_1 = arith.constant 0 : i32
    return %c0_i32, %c0_i32_0 : i32, i32
  }
  func.func @transform_2(%arg0: i32) -> (i32, i32) {
    %c0_i32 = arith.constant 0 : i32
    %c0_i32_0 = arith.constant 0 : i32
    return %c0_i32, %arg0 : i32, i32
  }
  func.func @transform_3(%arg0: i32) -> (i32, i32) {
    %c0_i32 = arith.constant 0 : i32
    %c0_i32_0 = arith.constant 0 : i32
    return %c0_i32, %arg0 : i32, i32
  }
}

</mosaic_0001>

<llo_original>
// kernel: hybrid_reparam_actor_forward.1
$region0: #{hybrid_reparam_actor_forward.1}
  #allocation0 [shape = 'u32[]', space=smem, size = 0x4, offset = 0x4, fixed_abs, tag = 'smem constant byte address 0x4 - core index']
  #allocation1 [shape = 'u32[72,128]{1,0:T(1,128)}', space=vmem, size = 0x9000, scoped, tag = 'internal scratch']
  %s0 = inlined_call_operand.vmem [shape: f32[24,8], index: 0, kind: input, shape index: {}]
  %s1 = inlined_call_operand.vmem [shape: f32[8,8], index: 1, kind: input, shape index: {}]
  %s2 = inlined_call_operand.vmem [shape: f32[3,384], index: 2, kind: input, shape index: {}]
  %s3 = inlined_call_operand.vmem [shape: f32[18,384], index: 3, kind: output, shape index: {}]
  %s4 = sld [smem:[#allocation0]]
  $region22: #{hybrid_reparam_actor_forward.1} parent=0
    _
  %s6 = ssub.s32 1, %s4
  %s7 = scalar_select 0, %s6, %s4
  // Predicated region
  $region2: #{hybrid_reparam_actor_forward.1} parent=0 // pred_check
    _
  $region3: #{hybrid_reparam_actor_forward.1} parent=0 // pred_check_branch
    %9 = sbr.rel (0) target = $region5
  $region4: #{hybrid_reparam_actor_forward.1} parent=0 // pred_region
    _
  $region5: #{hybrid_reparam_actor_forward.1} parent=0 // pred_fallthru
    _
  // Predicated region
  $region6: #{hybrid_reparam_actor_forward.1} parent=0 // pred_check
    _
  $region7: #{hybrid_reparam_actor_forward.1} parent=0 // pred_check_branch
    %11 = sbr.rel (0) target = $region9
  $region8: #{hybrid_reparam_actor_forward.1} parent=0 // pred_region
    _
  $region9: #{hybrid_reparam_actor_forward.1} parent=0 // pred_fallthru
    _
  // Predicated region
  $region10: #{hybrid_reparam_actor_forward.1} parent=0 // pred_check
    _
  $region11: #{hybrid_reparam_actor_forward.1} parent=0 // pred_check_branch
    %13 = sbr.rel (0) target = $region13
  $region12: #{hybrid_reparam_actor_forward.1} parent=0 // pred_region
    _
  $region13: #{hybrid_reparam_actor_forward.1} parent=0 // pred_fallthru
    _
  %v14 = vld [vmem:[%s2] sm:$0x77]
  %v15 = vld [vmem:[%s2 + $0x8] sm:$0x7]
  %v16 = vld [vmem:[%s0] sm:$0xff]
  %v17 = vld [vmem:[%s0 + $0x8] sm:$0xff]
  %v18 = vld [vmem:[%s0 + $0x10] sm:$0xff]
  %v19 = vld [vmem:[%s1] sm:$0xff]
  %21 = vset.pattern.permute.xlu0 0
  %22 = vperm.xlu0 %21, %v19
  %v23 = vpop.permute.xlu0 %22
  %v27 = vperm.slane %v14, 0
  %v28 = vperm.slane %v14, 4
  %v29 = vperm.slane %v15, 0
  %v33 = vperm.slane %v27, 0
  %v34 = vperm.slane %v28, 0
  %v35 = vperm.slane %v29, 0
  %v36 = vmul.f32 %v23, %v33
  %v37 = vmul.f32 %v23, %v34
  %v38 = vmul.f32 %v23, %v35
  %39 = vset.pattern.permute.xlu0 3
  %40 = vperm.xlu0 %39, %v19
  %v41 = vpop.permute.xlu0 %40
  %v43 = vadd.f32 %v41, %v36
  %v44 = vadd.f32 %v41, %v37
  %v45 = vadd.f32 %v41, %v38
  %46 = vset.pattern.permute.xlu0 1
  %47 = vperm.xlu0 %46, %v19
  %v48 = vpop.permute.xlu0 %47
  %v50 = vperm.slane %v14, 1
  %v51 = vperm.slane %v14, 5
  %v52 = vperm.slane %v15, 1
  %v56 = vperm.slane %v50, 1
  %v57 = vperm.slane %v51, 1
  %v58 = vperm.slane %v52, 1
  %v59 = vmul.f32 %v48, %v56
  %v60 = vmul.f32 %v48, %v57
  %v61 = vmul.f32 %v48, %v58
  %v62 = vadd.f32 %v43, %v59
  %v63 = vadd.f32 %v44, %v60
  %v64 = vadd.f32 %v45, %v61
  %65 = vset.pattern.permute.xlu0 2
  %66 = vperm.xlu0 %65, %v19
  %v67 = vpop.permute.xlu0 %66
  %v69 = vperm.slane %v14, 2
  %v70 = vperm.slane %v14, 6
  %v71 = vperm.slane %v15, 2
  %v75 = vperm.slane %v69, 2
  %v76 = vperm.slane %v70, 2
  %v77 = vperm.slane %v71, 2
  %v78 = vmul.f32 %v67, %v75
  %v79 = vmul.f32 %v67, %v76
  %v80 = vmul.f32 %v67, %v77
  %v81 = vadd.f32 %v62, %v78
  %v82 = vadd.f32 %v63, %v79
  %v83 = vadd.f32 %v64, %v80
  %v84 = vmax.f32 %v81, 0.0
  %v85 = vmax.f32 %v82, 0.0
  %v86 = vmax.f32 %v83, 0.0
  %88 = vset.pattern.permute.xlu0 0
  %89 = vperm.xlu0 %88, %v16
  %v90 = vpop.permute.xlu0 %89
  %93 = vset.pattern.permute.xlu0 0
  %94 = vperm.xlu0 %93, %v17
  %v95 = vpop.permute.xlu0 %94
  %98 = vset.pattern.permute.xlu0 0
  %99 = vperm.xlu0 %98, %v18
  %v100 = vpop.permute.xlu0 %99
  %v102 = vperm.slane %v84, 0
  %v103 = vperm.slane %v85, 0
  %v104 = vperm.slane %v86, 0
  %v105 = vmul.f32 %v90, %v102
  %v106 = vmul.f32 %v90, %v103
  %v107 = vmul.f32 %v90, %v104
  %v108 = vmul.f32 %v95, %v102
  %v109 = vmul.f32 %v95, %v103
  %v110 = vmul.f32 %v95, %v104
  %v111 = vmul.f32 %v100, %v102
  %v112 = vmul.f32 %v100, %v103
  %v113 = vmul.f32 %v100, %v104
  %114 = vset.pattern.permute.xlu0 4
  %115 = vperm.xlu0 %114, %v16
  %v116 = vpop.permute.xlu0 %115
  %118 = vset.pattern.permute.xlu0 4
  %119 = vperm.xlu0 %118, %v17
  %v120 = vpop.permute.xlu0 %119
  %122 = vset.pattern.permute.xlu0 4
  %123 = vperm.xlu0 %122, %v18
  %v124 = vpop.permute.xlu0 %123
  %v126 = vadd.f32 %v116, %v105
  %v127 = vadd.f32 %v116, %v106
  %v128 = vadd.f32 %v116, %v107
  %v129 = vadd.f32 %v120, %v108
  %v130 = vadd.f32 %v120, %v109
  %v131 = vadd.f32 %v120, %v110
  %v132 = vadd.f32 %v124, %v111
  %v133 = vadd.f32 %v124, %v112
  %v134 = vadd.f32 %v124, %v113
  %135 = vset.pattern.permute.xlu0 1
  %136 = vperm.xlu0 %135, %v16
  %v137 = vpop.permute.xlu0 %136
  %139 = vset.pattern.permute.xlu0 1
  %140 = vperm.xlu0 %139, %v17
  %v141 = vpop.permute.xlu0 %140
  %143 = vset.pattern.permute.xlu0 1
  %144 = vperm.xlu0 %143, %v18
  %v145 = vpop.permute.xlu0 %144
  %v147 = vperm.slane %v84, 1
  %v148 = vperm.slane %v85, 1
  %v149 = vperm.slane %v86, 1
  %v150 = vmul.f32 %v137, %v147
  %v151 = vmul.f32 %v137, %v148
  %v152 = vmul.f32 %v137, %v149
  %v153 = vmul.f32 %v141, %v147
  %v154 = vmul.f32 %v141, %v148
  %v155 = vmul.f32 %v141, %v149
  %v156 = vmul.f32 %v145, %v147
  %v157 = vmul.f32 %v145, %v148
  %v158 = vmul.f32 %v145, %v149
  %v159 = vadd.f32 %v126, %v150
  %v160 = vadd.f32 %v127, %v151
  %v161 = vadd.f32 %v128, %v152
  %v162 = vadd.f32 %v129, %v153
  %v163 = vadd.f32 %v130, %v154
  %v164 = vadd.f32 %v131, %v155
  %v165 = vadd.f32 %v132, %v156
  %v166 = vadd.f32 %v133, %v157
  %v167 = vadd.f32 %v134, %v158
  %168 = vset.pattern.permute.xlu0 2
  %169 = vperm.xlu0 %168, %v16
  %v170 = vpop.permute.xlu0 %169
  %172 = vset.pattern.permute.xlu0 2
  %173 = vperm.xlu0 %172, %v17
  %v174 = vpop.permute.xlu0 %173
  %176 = vset.pattern.permute.xlu0 2
  %177 = vperm.xlu0 %176, %v18
  %v178 = vpop.permute.xlu0 %177
  %v180 = vperm.slane %v84, 2
  %v181 = vperm.slane %v85, 2
  %v182 = vperm.slane %v86, 2
  %v183 = vmul.f32 %v170, %v180
  %v184 = vmul.f32 %v170, %v181
  %v185 = vmul.f32 %v170, %v182
  %v186 = vmul.f32 %v174, %v180
  %v187 = vmul.f32 %v174, %v181
  %v188 = vmul.f32 %v174, %v182
  %v189 = vmul.f32 %v178, %v180
  %v190 = vmul.f32 %v178, %v181
  %v191 = vmul.f32 %v178, %v182
  %v192 = vadd.f32 %v159, %v183
  %v193 = vadd.f32 %v160, %v184
  %v194 = vadd.f32 %v161, %v185
  %v195 = vadd.f32 %v162, %v186
  %v196 = vadd.f32 %v163, %v187
  %v197 = vadd.f32 %v164, %v188
  %v198 = vadd.f32 %v165, %v189
  %v199 = vadd.f32 %v166, %v190
  %v200 = vadd.f32 %v167, %v191
  %201 = vset.pattern.permute.xlu0 3
  %202 = vperm.xlu0 %201, %v16
  %v203 = vpop.permute.xlu0 %202
  %205 = vset.pattern.permute.xlu0 3
  %206 = vperm.xlu0 %205, %v17
  %v207 = vpop.permute.xlu0 %206
  %209 = vset.pattern.permute.xlu0 3
  %210 = vperm.xlu0 %209, %v18
  %v211 = vpop.permute.xlu0 %210
  %v213 = vperm.slane %v84, 3
  %v214 = vperm.slane %v85, 3
  %v215 = vperm.slane %v86, 3
  %v216 = vmul.f32 %v203, %v213
  %v217 = vmul.f32 %v203, %v214
  %v218 = vmul.f32 %v203, %v215
  %v219 = vmul.f32 %v207, %v213
  %v220 = vmul.f32 %v207, %v214
  %v221 = vmul.f32 %v207, %v215
  %v222 = vmul.f32 %v211, %v213
  %v223 = vmul.f32 %v211, %v214
  %v224 = vmul.f32 %v211, %v215
  %v225 = vadd.f32 %v192, %v216
  %v226 = vadd.f32 %v193, %v217
  %v227 = vadd.f32 %v194, %v218
  %v228 = vadd.f32 %v195, %v219
  %v229 = vadd.f32 %v196, %v220
  %v230 = vadd.f32 %v197, %v221
  %v231 = vadd.f32 %v198, %v222
  %v232 = vadd.f32 %v199, %v223
  %v233 = vadd.f32 %v200, %v224
  %v234 = vmax.f32 %v225, 0.0
  %v235 = vmax.f32 %v226, 0.0
  %v236 = vmax.f32 %v227, 0.0
  %v237 = vmax.f32 %v228, 0.0
  %v238 = vmax.f32 %v229, 0.0
  %v239 = vmax.f32 %v230, 0.0
  %v240 = vmax.f32 %v231, 0.0
  %v241 = vmax.f32 %v232, 0.0
  %v242 = vmax.f32 %v233, 0.0
  %243 = vset.pattern.permute.xlu0 6
  %244 = vperm.xlu0 %243, %v16
  %v245 = vpop.permute.xlu0 %244
  %247 = vset.pattern.permute.xlu0 6
  %248 = vperm.xlu0 %247, %v17
  %v249 = vpop.permute.xlu0 %248
  %251 = vset.pattern.permute.xlu0 6
  %252 = vperm.xlu0 %251, %v18
  %v253 = vpop.permute.xlu0 %252
  %v255 = vadd.f32 %v234, %v245
  %v256 = vadd.f32 %v235, %v245
  %v257 = vadd.f32 %v236, %v245
  %v258 = vadd.f32 %v237, %v249
  %v259 = vadd.f32 %v238, %v249
  %v260 = vadd.f32 %v239, %v249
  %v261 = vadd.f32 %v240, %v253
  %v262 = vadd.f32 %v241, %v253
  %v263 = vadd.f32 %v242, %v253
  %vm264 = vcmp.gt.f32.partialorder %v16, 0.5
  %vm265 = vcmp.gt.f32.partialorder %v17, 0.5
  %vm266 = vcmp.gt.f32.partialorder %v18, 0.5
  %v267 = vsel %vm264, 1, 0
  %v268 = vsel %vm265, 1, 0
  %v269 = vsel %vm266, 1, 0
  %270 = vset.pattern.permute.xlu0 5
  %271 = vperm.xlu0 %270, %v267
  %v272 = vpop.permute.xlu0 %271
  %273 = vset.pattern.permute.xlu0 5
  %274 = vperm.xlu0 %273, %v268
  %v275 = vpop.permute.xlu0 %274
  %276 = vset.pattern.permute.xlu0 5
  %277 = vperm.xlu0 %276, %v269
  %v278 = vpop.permute.xlu0 %277
  %vm279 = vcmp.eq.s32.totalorder %v272, 1
  %vm280 = vcmp.eq.s32.totalorder %v275, 1
  %vm281 = vcmp.eq.s32.totalorder %v278, 1
  %v282 = vsel %vm279, %v255, -1e+30
  %v283 = vsel %vm279, %v256, -1e+30
  %v284 = vsel %vm279, %v257, -1e+30
  %v285 = vsel %vm280, %v258, -1e+30
  %v286 = vsel %vm280, %v259, -1e+30
  %v287 = vsel %vm280, %v260, -1e+30
  %v288 = vsel %vm281, %v261, -1e+30
  %v289 = vsel %vm281, %v262, -1e+30
  %v290 = vsel %vm281, %v263, -1e+30
  %vm291 = vcmask 1041408
  %v292 = vsel %vm291, %v288, -inf
  %v293 = vmax.f32 %v282, %v292
  %v294 = vmax.f32 %v293, %v285
  %v295 = vrot.slane %v294, 4
  %v296 = vmax.f32 %v294, %v295
  %v297 = vrot.slane %v296, 2
  %v298 = vmax.f32 %v296, %v297
  %v299 = vrot.slane %v298, 1
  %v300 = vmax.f32 %v298, %v299
  %v301 = vsel %vm291, %v289, -inf
  %v302 = vmax.f32 %v283, %v301
  %v303 = vmax.f32 %v302, %v286
  %v304 = vrot.slane %v303, 4
  %v305 = vmax.f32 %v303, %v304
  %v306 = vrot.slane %v305, 2
  %v307 = vmax.f32 %v305, %v306
  %v308 = vrot.slane %v307, 1
  %v309 = vmax.f32 %v307, %v308
  %v310 = vsel %vm291, %v290, -inf
  %v311 = vmax.f32 %v284, %v310
  %v312 = vmax.f32 %v311, %v287
  %v313 = vrot.slane %v312, 4
  %v314 = vmax.f32 %v312, %v313
  %v315 = vrot.slane %v314, 2
  %v316 = vmax.f32 %v314, %v315
  %v317 = vrot.slane %v316, 1
  %v318 = vmax.f32 %v316, %v317
  %v319 = vsub.f32 %v282, %v300
  %v320 = vsub.f32 %v283, %v309
  %v321 = vsub.f32 %v284, %v318
  %v322 = vsub.f32 %v285, %v300
  %v323 = vsub.f32 %v286, %v309
  %v324 = vsub.f32 %v287, %v318
  %v325 = vsub.f32 %v288, %v300
  %v326 = vsub.f32 %v289, %v309
  %v327 = vsub.f32 %v290, %v318
  %v328 = vmul.f32 %v319, 1.442695
  %v329 = vpow.pop %v328
  %v330 = vmul.f32 %v320, 1.442695
  %v331 = vpow.pop %v330
  %v332 = vmul.f32 %v321, 1.442695
  %v333 = vpow.pop %v332
  %v334 = vmul.f32 %v322, 1.442695
  %v335 = vpow.pop %v334
  %v336 = vmul.f32 %v323, 1.442695
  %v337 = vpow.pop %v336
  %v338 = vmul.f32 %v324, 1.442695
  %v339 = vpow.pop %v338
  %v340 = vmul.f32 %v325, 1.442695
  %v341 = vpow.pop %v340
  %v342 = vmul.f32 %v326, 1.442695
  %v343 = vpow.pop %v342
  %v344 = vmul.f32 %v327, 1.442695
  %v345 = vpow.pop %v344
  %v346 = vadd.f32 %v329, %v335
  %v347 = vsel %vm291, %v341, 0.0
  %v348 = vadd.f32 %v346, %v347
  %v349 = vrot.slane %v348, 4
  %v350 = vadd.f32 %v348, %v349
  %v351 = vrot.slane %v350, 2
  %v352 = vadd.f32 %v350, %v351
  %v353 = vrot.slane %v352, 1
  %v354 = vadd.f32 %v352, %v353
  %v355 = vadd.f32 %v331, %v337
  %v356 = vsel %vm291, %v343, 0.0
  %v357 = vadd.f32 %v355, %v356
  %v358 = vrot.slane %v357, 4
  %v359 = vadd.f32 %v357, %v358
  %v360 = vrot.slane %v359, 2
  %v361 = vadd.f32 %v359, %v360
  %v362 = vrot.slane %v361, 1
  %v363 = vadd.f32 %v361, %v362
  %v364 = vadd.f32 %v333, %v339
  %v365 = vsel %vm291, %v345, 0.0
  %v366 = vadd.f32 %v364, %v365
  %v367 = vrot.slane %v366, 4
  %v368 = vadd.f32 %v366, %v367
  %v369 = vrot.slane %v368, 2
  %v370 = vadd.f32 %v368, %v369
  %v371 = vrot.slane %v370, 1
  %v372 = vadd.f32 %v370, %v371
  %v373 = vrcp.pop %v354
  %v374 = vrcp.pop %v363
  %v375 = vrcp.pop %v372
  %v376 = vmul.f32 %v354, %v373
  %v377 = vmul.f32 %v363, %v374
  %v378 = vmul.f32 %v372, %v375
  %v379 = vsub.f32 2.0, %v376
  %v380 = vsub.f32 2.0, %v377
  %v381 = vsub.f32 2.0, %v378
  %v382 = vmul.f32 %v373, %v379
  %v383 = vmul.f32 %v374, %v380
  %v384 = vmul.f32 %v375, %v381
  %v385 = vmul.f32 %v329, %v382
  %v386 = vmul.f32 %v331, %v383
  %v387 = vmul.f32 %v333, %v384
  %v388 = vmul.f32 %v335, %v382
  %v389 = vmul.f32 %v337, %v383
  %v390 = vmul.f32 %v339, %v384
  %v391 = vmul.f32 %v341, %v382
  %v392 = vmul.f32 %v343, %v383
  %v393 = vmul.f32 %v345, %v384
  %v394 = vsel %vm279, %v385, %v255
  %v395 = vsel %vm279, %v386, %v256
  %v396 = vsel %vm279, %v387, %v257
  %v397 = vsel %vm280, %v388, %v258
  %v398 = vsel %vm280, %v389, %v259
  %v399 = vsel %vm280, %v390, %v260
  %v400 = vsel %vm281, %v391, %v261
  %v401 = vsel %vm281, %v392, %v262
  %v402 = vsel %vm281, %v393, %v263
  %403 = vst [vmem:[%s3] sm:$0xff] %v394
  %404 = vst [vmem:[%s3 + $0x8] sm:$0xff] %v395
  %405 = vst [vmem:[%s3 + $0x10] sm:$0xff] %v396
  %406 = vst [vmem:[%s3 + $0x18] sm:$0xff] %v397
  %407 = vst [vmem:[%s3 + $0x20] sm:$0xff] %v398
  %408 = vst [vmem:[%s3 + $0x28] sm:$0xff] %v399
  %409 = vst [vmem:[%s3 + $0x30] sm:$0x3] %v400
  %410 = vst [vmem:[%s3 + $0x38] sm:$0x3] %v401
  %411 = vst [vmem:[%s3 + $0x40] sm:$0x3] %v402
  // Predicated region
  $region14: #{hybrid_reparam_actor_forward.1} parent=0 // pred_check
    _
  $region15: #{hybrid_reparam_actor_forward.1} parent=0 // pred_check_branch
    %413 = sbr.rel (0) target = $region17
  $region16: #{hybrid_reparam_actor_forward.1} parent=0 // pred_region
    _
  $region17: #{hybrid_reparam_actor_forward.1} parent=0 // pred_fallthru
    _
  // Predicated region
  $region18: #{hybrid_reparam_actor_forward.1} parent=0 // pred_check
    _
  $region19: #{hybrid_reparam_actor_forward.1} parent=0 // pred_check_branch
    %415 = sbr.rel (0) target = $region21
  $region20: #{hybrid_reparam_actor_forward.1} parent=0 // pred_region
    _
  $region21: #{hybrid_reparam_actor_forward.1} parent=0 // pred_fallthru
    _

</llo_original>
